<compile_context>
chip_gen: v5e
topology: v5e:2x2
jax: 0.10.0
libtpu: 0.0.40
codegen_flags: <defaults>
</compile_context>

<pallas_src>
import functools

import jax
import jax.numpy as jnp
from jax.experimental import pallas as pl
from jax.experimental.pallas import tpu as pltpu

LANE = 128  # TPU lane width; small feature dims are zero-padded up to this.


# ---------------- Pallas kernels ----------------

def _linear_kernel(x_ref, w_ref, b_ref, o_ref):
    # out = x @ W_pad + b_pad   (W pre-transposed & lane-padded: [in_f, out_pad])
    o_ref[...] = (
        jnp.dot(x_ref[...], w_ref[...], preferred_element_type=jnp.float32)
        + b_ref[...]
    )


def _fused_linear_kernel(x_ref, w1_ref, b1_ref, w2_ref, b2_ref, o_ref, h_ref):
    # linear1 -> linear2 in a single kernel body; intermediate lives in VMEM scratch.
    # Padded lanes of h are exactly 0 (zero-padded w1/b1) and the padded rows of w2 are 0,
    # so the chained result is exact.
    h_ref[...] = (
        jnp.dot(x_ref[...], w1_ref[...], preferred_element_type=jnp.float32)
        + b1_ref[...]
    )
    o_ref[...] = (
        jnp.dot(h_ref[...], w2_ref[...], preferred_element_type=jnp.float32)
        + b2_ref[...]
    )


def _embedding_kernel(ids_ref, table_ref, o_ref):
    # ids_ref lives in SMEM (scalar-indexed). Gather the n rows from the lane-padded
    # VMEM table and write the output with ONE full [n, 128] unmasked store.
    n = o_ref.shape[0]
    rows = [table_ref[pl.ds(ids_ref[i], 1), :] for i in range(n)]  # n small & static
    o_ref[...] = jnp.concatenate(rows, axis=0)


# ---------------- jitted wrappers (return lane-padded outputs) ----------------

@jax.jit
def pallas_linear_padded(x, w_t_pad, b_pad):
    """x: [B, in_f]; w_t_pad: [in_f, out_pad]; b_pad: [1, out_pad] -> [B, out_pad]."""
    B, in_f = x.shape
    out_pad = w_t_pad.shape[1]
    return pl.pallas_call(
        _linear_kernel,
        out_shape=jax.ShapeDtypeStruct((B, out_pad), jnp.float32),
        in_specs=[
            pl.BlockSpec((B, in_f), lambda: (0, 0)),
            pl.BlockSpec((in_f, out_pad), lambda: (0, 0)),
            pl.BlockSpec((1, out_pad), lambda: (0, 0)),
        ],
        out_specs=pl.BlockSpec((B, out_pad), lambda: (0, 0)),
        cost_estimate=pl.CostEstimate(
            flops=2 * B * in_f * out_pad,
            transcendentals=0,
            bytes_accessed=4 * (B * in_f + in_f * out_pad + out_pad + B * out_pad),
        ),
    )(x, w_t_pad, b_pad)
    # TODO(synk): for large B add grid=(pl.cdiv(B, tile),) with
    # dimension_semantics=("parallel",); tile ~2048-4096 rows (v7x 64 MiB VMEM / 2 TCs,
    # v6e 128 MiB), and switch weights/activations to bf16 once the kernel is MXU-bound.


@jax.jit
def pallas_linear_chain_padded(x, w1_t_pad, b1_pad, w2f_t_pad, b2_pad):
    """Fused linear1 -> linear2. x: [B, in_f] -> [B, out_pad]; intermediate in VMEM."""
    B, in_f = x.shape
    mid_pad = w1_t_pad.shape[1]
    out_pad = w2f_t_pad.shape[1]
    return pl.pallas_call(
        _fused_linear_kernel,
        out_shape=jax.ShapeDtypeStruct((B, out_pad), jnp.float32),
        in_specs=[
            pl.BlockSpec((B, in_f), lambda: (0, 0)),
            pl.BlockSpec((in_f, mid_pad), lambda: (0, 0)),
            pl.BlockSpec((1, mid_pad), lambda: (0, 0)),
            pl.BlockSpec((mid_pad, out_pad), lambda: (0, 0)),
            pl.BlockSpec((1, out_pad), lambda: (0, 0)),
        ],
        out_specs=pl.BlockSpec((B, out_pad), lambda: (0, 0)),
        scratch_shapes=[pltpu.VMEM((B, mid_pad), jnp.float32)],
        cost_estimate=pl.CostEstimate(
            flops=2 * B * (in_f * mid_pad + mid_pad * out_pad),
            transcendentals=0,
            bytes_accessed=4 * (B * in_f + in_f * mid_pad + mid_pad
                                + mid_pad * out_pad + out_pad + B * out_pad),
        ),
    )(x, w1_t_pad, b1_pad, w2f_t_pad, b2_pad)


@jax.jit
def pallas_embedding_padded(ids, table_pad):
    """ids: [N] int, table_pad: [vocab, emb_pad] f32 (zero-padded lanes) -> [N, emb_pad]."""
    n = ids.shape[0]
    vocab, emb_pad = table_pad.shape
    # Clamp: dynamic VMEM indexing has no bounds check; OOB ids would read adjacent VMEM.
    ids = jnp.clip(ids.astype(jnp.int32), 0, vocab - 1)
    return pl.pallas_call(
        _embedding_kernel,
        out_shape=jax.ShapeDtypeStruct((n, emb_pad), jnp.float32),
        in_specs=[
            pl.BlockSpec(memory_space=pltpu.MemorySpace.SMEM),   # ids -> SMEM scalars
            pl.BlockSpec((vocab, emb_pad), lambda: (0, 0)),
        ],
        out_specs=pl.BlockSpec((n, emb_pad), lambda: (0, 0)),
    )(ids, table_pad)
    # TODO(synk): if vocab grows to 10k+, switch to PrefetchScalarGridSpec(num_scalar_prefetch=1)
    # with grid=(n,) and pl.BlockSpec((pl.Element(1), emb_pad), lambda i, ids: (ids[i], 0))
    # so rows are DMA-gathered from HBM instead of staging the whole table in VMEM.


# ---------------- ModuleDictDemo equivalent ----------------

def _pad_linear_params(w, b, in_pad=None, lane=LANE):
    """torch-layout w:[out_f,in_f], b:[out_f] -> (w_t_pad:[in_pad or in_f, out_pad], b_pad:[1,out_pad])."""
    out_f, in_f = w.shape
    out_pad = max(lane, ((out_f + lane - 1) // lane) * lane)
    rows = in_f if in_pad is None else in_pad
    w_t_pad = jnp.zeros((rows, out_pad), jnp.float32).at[:in_f, :out_f].set(w.T)
    b_pad = jnp.zeros((1, out_pad), jnp.float32).at[:, :out_f].set(b)
    return w_t_pad, b_pad


class ModuleDictDemo:
    """Pallas/JAX port of the torch ModuleDict module."""

    def __init__(self, key):
        k1, k2, k3, k4, k5 = jax.random.split(key, 5)
        # torch defaults: U(-1/sqrt(fan_in), 1/sqrt(fan_in)) for Linear, N(0,1) for Embedding.
        bound1 = 1.0 / jnp.sqrt(10.0)
        self.w1 = jax.random.uniform(k1, (5, 10), jnp.float32, -bound1, bound1)
        self.b1 = jax.random.uniform(k2, (5,), jnp.float32, -bound1, bound1)
        bound2 = 1.0 / jnp.sqrt(5.0)
        self.w2 = jax.random.uniform(k3, (2, 5), jnp.float32, -bound2, bound2)
        self.b2 = jax.random.uniform(k4, (2,), jnp.float32, -bound2, bound2)
        self.emb = jax.random.normal(k5, (100, 10), jnp.float32)

        # One-time transpose + lane padding (hoisted out of the per-call path).
        self.w1_t_pad, self.b1_pad = _pad_linear_params(self.w1, self.b1)
        self.w2_t_pad, self.b2_pad = _pad_linear_params(self.w2, self.b2)
        # Extra copy of w2 padded along the input dim to LANE for the fused path
        # (its input is the lane-padded [B, 128] intermediate).
        self.w2f_t_pad, _ = _pad_linear_params(self.w2, self.b2, in_pad=LANE)
        self.out1, self.out2 = 5, 2

        self.emb_dim = 10
        self.emb_pad = jnp.zeros((100, LANE), jnp.float32).at[:, :self.emb_dim].set(self.emb)

    def __call__(self, x, mode="linear1"):
        # Un-pad slices happen here (final consumer), not inside the jitted wrappers.
        if mode == "linear1":
            return pallas_linear_padded(x, self.w1_t_pad, self.b1_pad)[:, : self.out1]
        elif mode == "linear2":
            return pallas_linear_padded(x, self.w2_t_pad, self.b2_pad)[:, : self.out2]
        elif mode == "embedding":
            return pallas_embedding_padded(x, self.emb_pad)[:, : self.emb_dim]
        else:
            raise KeyError(mode)

    def chained(self, x):
        """linear2(linear1(x)) fused into a single pallas_call."""
        return pallas_linear_chain_padded(
            x, self.w1_t_pad, self.b1_pad, self.w2f_t_pad, self.b2_pad
        )[:, : self.out2]


if __name__ == "__main__":
    key = jax.random.PRNGKey(0)
    kx, ki, kmod = jax.random.split(key, 3)

    model = ModuleDictDemo(kmod)

    # Default path: mode='linear1', x: [2, 10]
    x = jax.random.normal(kx, (2, 10), jnp.float32)
    y1 = model(x, mode="linear1")
    jax.block_until_ready(y1)
    assert y1.shape == (2, 5)
    assert jnp.allclose(y1, x @ model.w1.T + model.b1, atol=1e-5)

    # linear2 path: x2: [2, 5]
    x2 = jax.random.normal(kx, (2, 5), jnp.float32)
    y2 = model(x2, mode="linear2")
    jax.block_until_ready(y2)
    assert y2.shape == (2, 2)
    assert jnp.allclose(y2, x2 @ model.w2.T + model.b2, atol=1e-5)

    # fused linear1 -> linear2 path (single kernel launch)
    yc = model.chained(x)
    jax.block_until_ready(yc)
    assert yc.shape == (2, 2)
    ref_c = (x @ model.w1.T + model.b1) @ model.w2.T + model.b2
    assert jnp.allclose(yc, ref_c, atol=1e-5)

    # embedding path: int indices [8] in [0, 100)
    ids = jax.random.randint(ki, (8,), 0, 100, dtype=jnp.int32)
    y3 = model(ids, mode="embedding")
    jax.block_until_ready(y3)
    assert y3.shape == (8, 10)
    assert jnp.allclose(y3, model.emb[ids], atol=1e-5)

    print("KERNEL_OK")
</pallas_src>

<mosaic_0001>
module attributes {stable_mosaic.version = 11 : i64} {
  func.func @_linear_kernel(%arg0: memref<2x10xf32, #tpu.memory_space<vmem>>, %arg1: memref<10x128xf32, #tpu.memory_space<vmem>>, %arg2: memref<1x128xf32, #tpu.memory_space<vmem>>, %arg3: memref<2x128xf32, #tpu.memory_space<vmem>>) attributes {dimension_semantics = [], scalar_prefetch = 0 : i64, scratch_operands = 0 : i64, tpu.core_type = #tpu.core_type<tc>} {
    %c0 = arith.constant 0 : index
    %c0_0 = arith.constant 0 : index
    %0 = vector.load %arg0[%c0, %c0_0] : memref<2x10xf32, #tpu.memory_space<vmem>>, vector<2x10xf32>
    %c0_1 = arith.constant 0 : index
    %c0_2 = arith.constant 0 : index
    %1 = vector.load %arg1[%c0_1, %c0_2] : memref<10x128xf32, #tpu.memory_space<vmem>>, vector<10x128xf32>
    %cst = arith.constant dense<0.000000e+00> : vector<2x128xf32>
    %2 = tpu.matmul %0, %1, %cst {dimension_numbers = #tpu.dot_dimension_numbers<[1], [0], [0], [1], [0, 0, 1, 1], [], []>} : vector<2x10xf32>, vector<10x128xf32>, vector<2x128xf32> -> vector<2x128xf32>
    %c0_3 = arith.constant 0 : index
    %c0_4 = arith.constant 0 : index
    %3 = vector.load %arg2[%c0_3, %c0_4] : memref<1x128xf32, #tpu.memory_space<vmem>>, vector<1x128xf32>
    %4 = vector.broadcast %3 : vector<1x128xf32> to vector<2x128xf32>
    %5 = arith.addf %2, %4 : vector<2x128xf32>
    %c0_5 = arith.constant 0 : index
    %c0_6 = arith.constant 0 : index
    %6 = vector.load %arg3[%c0_5, %c0_6] : memref<2x128xf32, #tpu.memory_space<vmem>>, vector<2x128xf32>
    tpu.vector_store %arg3[%c0_5, %c0_6], %5 {strides = array<i32>} : memref<2x128xf32, #tpu.memory_space<vmem>>, vector<2x128xf32>,
    return
  }
}

</mosaic_0001>

<llo_original>
// kernel: pallas_linear_padded.1
$region0: #{pallas_linear_padded.1}
  #allocation0 [shape = 'u32[]', space=smem, size = 0x4, offset = 0x4, fixed_abs, tag = 'smem constant byte address 0x4 - core index']
  #allocation1 [shape = 'u32[72,128]{1,0:T(1,128)}', space=vmem, size = 0x9000, scoped, tag = 'internal scratch']
  %s0 = inlined_call_operand.hbm [shape: f32[2,10], index: 0, kind: input, shape index: {}]
  %s1 = inlined_call_operand.hbm [shape: f32[10,128], index: 1, kind: input, shape index: {}]
  %s2 = inlined_call_operand.vmem [shape: f32[1,128], index: 2, kind: input, shape index: {}]
  %s3 = inlined_call_operand.hbm [shape: f32[2,128], index: 3, kind: output, shape index: {}]
  %s4 = sld [smem:[#allocation0]]
  $region30: #{pallas_linear_padded.1} parent=0
    _
  %s6 = ssub.s32 1, %s4
  %s7 = scalar_select 0, %s6, %s4
  $region1: #{pallas_linear_padded.1} parent=0
    #allocation2 [shape = 'u8[1024]{0}', space=vmem, size = 0x400, scoped, tag = 'input window, operand 0, single buffered']
    #allocation3 [shape = 's32[1]{0}', space=sflag, size = 0x4, scoped, tag = 'scoped memory for pallas_linear_padded.1']
    #allocation4 [shape = 's32[1]{0}', space=sflag, size = 0x4, scoped, tag = 'scoped memory for pallas_linear_padded.1']
    #allocation5 [shape = 'u8[8192]{0}', space=vmem, size = 0x2000, scoped, tag = 'input window, operand 1, single buffered']
    #allocation6 [shape = 's32[1]{0}', space=sflag, size = 0x4, scoped, tag = 'scoped memory for pallas_linear_padded.1']
    #allocation7 [shape = 'u8[1024]{0}', space=vmem, size = 0x400, scoped, tag = 'output window, operand 0, single buffered']
    %8 = vsyncpa [#allocation3], 0
    %9 = vsyncpa [#allocation6], 0
    %10 = vsyncpa [#allocation4], 0
    // Predicated region
    $region2: #{pallas_linear_padded.1} parent=1 // pred_check
      _
    $region3: #{pallas_linear_padded.1} parent=1 // pred_check_branch
      %12 = sbr.rel (0) target = $region5
    $region4: #{pallas_linear_padded.1} parent=1 // pred_region
      %14 = vsyncadd [#allocation3], 0
      %s16 = sshll.u32 %s0, 4
      %s17 = int_to_ptr.hbm [resolvable:$true] %s16
      %s18 = sshll.u32 [#allocation2], 4
      %s19 = int_to_ptr.vmem [resolvable:$true] %s18
      %21 = dma.hbm_to_vmem [thread:$0]  %s17, 32, %s19, [#allocation3]
    $region5: #{pallas_linear_padded.1} parent=1 // pred_fallthru
      _
    // Predicated region
    $region6: #{pallas_linear_padded.1} parent=1 // pred_check
      _
    $region7: #{pallas_linear_padded.1} parent=1 // pred_check_branch
      %23 = sbr.rel (0) target = $region9
    $region8: #{pallas_linear_padded.1} parent=1 // pred_region
      %25 = vsyncadd [#allocation6], 0
      %s26 = sshll.u32 %s1, 4
      %s27 = int_to_ptr.hbm [resolvable:$true] %s26
      %s28 = sshll.u32 [#allocation5], 4
      %s29 = int_to_ptr.vmem [resolvable:$true] %s28
      %34 = dma.hbm_to_vmem [thread:$0]  %s27, 256, %s29, [#allocation6], 128, 128, 8
    $region9: #{pallas_linear_padded.1} parent=1 // pred_fallthru
      _
    // Predicated region
    $region10: #{pallas_linear_padded.1} parent=1 // pred_check
      _
    $region11: #{pallas_linear_padded.1} parent=1 // pred_check_branch
      %36 = sbr.rel (0) target = $region13
    $region12: #{pallas_linear_padded.1} parent=1 // pred_region
      _
    $region13: #{pallas_linear_padded.1} parent=1 // pred_fallthru
      _
    // Predicated region
    $region14: #{pallas_linear_padded.1} parent=1 // pred_check
      _
    $region15: #{pallas_linear_padded.1} parent=1 // pred_check_branch
      %38 = sbr.rel (0) target = $region17
    $region16: #{pallas_linear_padded.1} parent=1 // pred_region
      %40 = dma.done [#allocation3], 32
    $region17: #{pallas_linear_padded.1} parent=1 // pred_fallthru
      _
    // Predicated region
    $region18: #{pallas_linear_padded.1} parent=1 // pred_check
      _
    $region19: #{pallas_linear_padded.1} parent=1 // pred_check_branch
      %42 = sbr.rel (0) target = $region21
    $region20: #{pallas_linear_padded.1} parent=1 // pred_region
      %44 = dma.done [#allocation6], 256
    $region21: #{pallas_linear_padded.1} parent=1 // pred_fallthru
      _
    %v45 = vld [vmem:[#allocation2] sm:$0x3]
    %v46 = vld [vmem:[#allocation5] sm:$0xff]
    %v47 = vld [vmem:[#allocation5 + $0x8] sm:$0x3]
    %v48 = vld [vmem:[%s2] sm:$0x1]
    %v50 = vperm.slane %v48, 0
    %vm52 = vcmask 80896
    %v54 = vsel %vm52, %v45, 0
    %vm56 = vcmask 1041408
    %v58 = vsel %vm56, %v47, 0
    %60 = vmatpush.msra.mxu0 0.0
    %61 = vmatpush.msra.mxu0 0.0
    %62 = vmatpush.msra.mxu0 0.0
    %63 = vmatpush.msra.mxu0 0.0
    %64 = vmatpush.msra.mxu0 0.0
    %65 = vmatpush.msra.mxu0 0.0
    %66 = vmatpush.msra.mxu0 0.0
    %67 = vmatpush.msra.mxu0 0.0
    %68 = vmatpush.msra.mxu0 0.0
    %69 = vmatpush.msra.mxu0 0.0
    %70 = vmatpush.msra.mxu0 0.0
    %71 = vmatpush.msra.mxu0 0.0
    %72 = vmatpush.msra.mxu0 0.0
    %73 = vmatpush.msra.mxu0 0.0
    %74 = vmatpush.msra.mxu0 %v58
    %75 = vmatpush.msra.mxu0 %v46
    %76 = vmatmul.f32.gmra.mxu0 %v54
    %v77 = vpop.f32.mrf.mxu0
    %v78 = vadd.f32 %v50, %v77
    %79 = vdwg.mxu0
    %80 = vst [vmem:[#allocation7] sm:$0x3] %v78
    // Predicated region
    $region22: #{pallas_linear_padded.1} parent=1 // pred_check
      _
    $region23: #{pallas_linear_padded.1} parent=1 // pred_check_branch
      %82 = sbr.rel (0) target = $region25
    $region24: #{pallas_linear_padded.1} parent=1 // pred_region
      %84 = vsyncadd [#allocation4], 0
      %s86 = sshll.u32 [#allocation7], 4
      %s87 = int_to_ptr.vmem [resolvable:$true] %s86
      %s88 = sshll.u32 %s3, 4
      %s89 = int_to_ptr.hbm [resolvable:$true] %s88
      %91 = dma.vmem_to_hbm [thread:$0]  %s87, 32, %s89, [#allocation4]
    $region25: #{pallas_linear_padded.1} parent=1 // pred_fallthru
      _
    // Predicated region
    $region26: #{pallas_linear_padded.1} parent=1 // pred_check
      _
    $region27: #{pallas_linear_padded.1} parent=1 // pred_check_branch
      %93 = sbr.rel (0) target = $region29
    $region28: #{pallas_linear_padded.1} parent=1 // pred_region
      %95 = dma.done [#allocation4], 32
    $region29: #{pallas_linear_padded.1} parent=1 // pred_fallthru
      _
    %96 = vsyncpa [#allocation3], 1
    %97 = vsyncpa [#allocation6], 1
    %98 = vsyncpa [#allocation4], 1

</llo_original>
